<compile_context>
chip_gen: v6e
topology: v6e:2x2x1
jax: 0.10.0
libtpu: 0.0.40
codegen_flags: <defaults>
</compile_context>

<pallas_src>
import math

import jax
import jax.numpy as jnp
from jax import lax
from jax.experimental import pallas as pl
from jax.experimental.pallas import tpu as pltpu


# ------------------------- text projection kernel -------------------------- #

def _text_project_kernel(text_ref, wt_ref, bt_ref, tlat_ref):
    f32 = jnp.float32
    t = jnp.dot(text_ref[...], wt_ref[...], preferred_element_type=f32) + bt_ref[...]
    ssq = jnp.maximum(jnp.sum(t * t, axis=-1, keepdims=True), 1e-24)
    tlat_ref[...] = (t * lax.rsqrt(ssq)).astype(tlat_ref.dtype)


# ------------------------- contrastive loss kernel ------------------------- #

def _mulan_contrastive_kernel(audio_ref, wa_ref, ba_ref, trows_ref, tlatT_ref,
                              temp_ref, loss_ref,
                              colsum, diag_acc, logden_acc):
    f32 = jnp.float32
    bf16 = jnp.bfloat16
    i = pl.program_id(0)
    n = pl.num_programs(0)
    tm = audio_ref.shape[0]
    B = tlatT_ref.shape[1]
    eps = 1e-20

    @pl.when(i == 0)
    def _init():
        colsum[...] = jnp.zeros_like(colsum)
        diag_acc[...] = jnp.zeros_like(diag_acc)
        logden_acc[...] = jnp.zeros_like(logden_acc)

    # Temperature already exponentiated in the wrapper (scalar, SMEM).
    temp = temp_ref[0, 0]

    # Audio tile: Linear (bf16 operands, f32 MXU accumulation), l2norm via rsqrt,
    # temperature folded into the normalized latents.
    a = jnp.dot(audio_ref[...], wa_ref[...], preferred_element_type=f32) + ba_ref[...]
    a_ssq = jnp.maximum(jnp.sum(a * a, axis=-1, keepdims=True), 1e-24)
    a = a * (lax.rsqrt(a_ssq) * temp)                          # [tm, DL] f32

    # Positive pairs (diagonal), computed diag-free on the VPU against the
    # matching (tiled) normalized text rows. Numerator is -x (no exp->log).
    diag_sims = jnp.sum(a * trows_ref[...].astype(f32), axis=-1, keepdims=True)  # [tm,1]
    diag_acc[...] += diag_sims

    # Pairwise temperature-scaled sims: bf16 operands, f32 accumulation, resident
    # text latents already transposed [DL, B] -> plain (m,k)x(k,n) MXU layout.
    sims = jnp.dot(a.astype(bf16), tlatT_ref[...], preferred_element_type=f32)   # [tm, B]
    exp_sims = jnp.exp(sims)

    # Zero the diagonal once; reuse for BOTH decoupled denominators (avoids the
    # rowsum - exp(diag) cancellation flagged in review).
    row = lax.broadcasted_iota(jnp.int32, (tm, B), 0) + i * tm
    col = lax.broadcasted_iota(jnp.int32, (tm, B), 1)
    off = jnp.where(row == col, 0.0, exp_sims)                  # [tm, B]

    den_i = jnp.sum(off, axis=-1, keepdims=True)                # [tm, 1]
    logden_acc[...] += jnp.log(jnp.maximum(den_i, eps))

    # Vreg-aligned [8, B] column-sum partials: full-vreg VPU adds per step,
    # single cross-sublane reduce only in the finalize.
    part = off[0:8, :]
    for g in range(1, tm // 8):
        part = part + off[g * 8:(g + 1) * 8, :]
    colsum[...] += part

    @pl.when(i == n - 1)
    def _finalize():
        den_j = jnp.sum(colsum[...], axis=0, keepdims=True)     # [1, B]
        log_den_j = jnp.log(jnp.maximum(den_j, eps))
        loss = (-jnp.sum(diag_acc[...])
                + 0.5 * (jnp.sum(logden_acc[...]) + jnp.sum(log_den_j))) / B
        loss_ref[0, 0] = loss


# ------------------------------- wrapper ------------------------------------ #

def _pad_last(x, mult):
    pad = (-x.shape[-1]) % mult
    return x if pad == 0 else jnp.pad(x, ((0, 0), (0, pad)))


def _pad_first(x, mult):
    pad = (-x.shape[0]) % mult
    return x if pad == 0 else jnp.pad(x, ((0, pad), (0, 0)))


def mulan_contrastive_loss(audio_embeds, text_embeds, params, *, tm=128):
    """MuLanModel projection + l2norm + decoupled softmax contrastive loss.

    tm=128 targets v5e's 128-wide MXU; use tm=256 on v6e/v7x when B allows.
    """
    f32 = jnp.float32
    bf16 = jnp.bfloat16

    # Pad encoder feature dim to 128 lanes (zero pad is exact for the matmul) and
    # cast matmul operands to bf16 (f32 accumulation inside the kernels).
    ae = _pad_last(audio_embeds, 128).astype(bf16)
    te = _pad_last(text_embeds, 128).astype(bf16)
    wa = _pad_first(params["wa"], 128).astype(bf16)
    wt = _pad_first(params["wt"], 128).astype(bf16)
    ba = params["ba"].astype(f32)
    bt = params["bt"].astype(f32)
    temp_exp = jnp.exp(params["temp"].astype(f32))      # scalar exp hoisted out of the kernel

    B, DP = ae.shape
    DL = wa.shape[1]
    tm = min(tm, B)
    assert B % tm == 0 and tm % 8 == 0, (B, tm)
    assert DP % 128 == 0 and DL % 128 == 0, (DP, DL)

    vmem = pltpu.MemorySpace.VMEM
    smem = pltpu.MemorySpace.SMEM

    # --- phase 1: project + l2norm ALL text latents once (outside the grid) ---
    t_lat = pl.pallas_call(
        _text_project_kernel,
        out_shape=jax.ShapeDtypeStruct((B, DL), bf16),
        grid=(1,),
        in_specs=[
            pl.BlockSpec((B, DP), lambda i: (0, 0), memory_space=vmem),
            pl.BlockSpec((DP, DL), lambda i: (0, 0), memory_space=vmem),
            pl.BlockSpec((1, DL), lambda i: (0, 0), memory_space=vmem),
        ],
        out_specs=pl.BlockSpec((B, DL), lambda i: (0, 0), memory_space=vmem),
        compiler_params=pltpu.CompilerParams(vmem_limit_bytes=32 * 1024 * 1024),
    )(te, wt, bt)
    t_lat_T = t_lat.T                                   # [DL, B] bf16, one-time transpose

    # --- phase 2: row-tiled audio projection + contrastive loss ---
    cost = pl.CostEstimate(
        flops=2 * B * DP * DL + 2 * B * B * DL + 10 * B * DL + 6 * B * B,
        transcendentals=B * B + 3 * B,
        bytes_accessed=(B * DP + DP * DL + 2 * B * DL) * 2 + DL * 4 + 8,
    )

    out = pl.pallas_call(
        _mulan_contrastive_kernel,
        out_shape=jax.ShapeDtypeStruct((1, 1), f32),
        grid=(B // tm,),
        in_specs=[
            pl.BlockSpec((tm, DP), lambda i: (i, 0), memory_space=vmem),   # audio tile
            pl.BlockSpec((DP, DL), lambda i: (0, 0), memory_space=vmem),   # wa (resident)
            pl.BlockSpec((1, DL), lambda i: (0, 0), memory_space=vmem),    # ba (resident)
            pl.BlockSpec((tm, DL), lambda i: (i, 0), memory_space=vmem),   # matching text rows
            pl.BlockSpec((DL, B), lambda i: (0, 0), memory_space=vmem),    # t_lat^T (resident)
            pl.BlockSpec(memory_space=smem),                               # exp(temperature)
        ],
        out_specs=pl.BlockSpec(memory_space=smem),
        scratch_shapes=[
            pltpu.VMEM((8, B), f32),     # vreg-aligned diag-zeroed column-sum partials
            pltpu.VMEM((tm, 1), f32),    # sum of diagonal sims (numerator)
            pltpu.VMEM((tm, 1), f32),    # sum of log(den_i)
        ],
        compiler_params=pltpu.CompilerParams(
            dimension_semantics=("arbitrary",),   # reduction carry across row tiles
            vmem_limit_bytes=32 * 1024 * 1024,
        ),
        cost_estimate=cost,
    )(ae, wa, ba, t_lat, t_lat_T, temp_exp)
    return out[0, 0]


# --------------------- stub encoders (glue, plain JAX) ---------------------- #

def audio_transformer_stub(wavs, p):
    # TODO(synk): external AudioSpectrogramTransformer stubbed (frame->linear->gelu->mean-pool->LN)
    B, T = wavs.shape
    P = p["patch_w"].shape[0]
    frames = wavs.reshape(B, T // P, P)
    h = jax.nn.gelu(frames @ p["patch_w"] + p["patch_b"])
    emb = jnp.mean(h, axis=1)
    mu = jnp.mean(emb, axis=-1, keepdims=True)
    var = jnp.var(emb, axis=-1, keepdims=True)
    return (emb - mu) / jnp.sqrt(var + 1e-5)


def text_transformer_stub(tokens, p):
    # TODO(synk): external TextTransformer stubbed (token-embed -> mean-pool -> LN)
    h = p["tok_emb"][tokens]          # [B, S, Dt]
    emb = jnp.mean(h, axis=1)
    mu = jnp.mean(emb, axis=-1, keepdims=True)
    var = jnp.var(emb, axis=-1, keepdims=True)
    return (emb - mu) / jnp.sqrt(var + 1e-5)


# ------------------------------ reference ----------------------------------- #

def reference_loss(audio_embeds, text_embeds, params):
    # Mirrors MuLanModel default forward (SoftmaxContrastiveLearning, decoupled=True),
    # using the same bf16-operand / f32-accumulation matmul precision as the kernel.
    f32 = jnp.float32
    bf16 = jnp.bfloat16
    a = jnp.dot(audio_embeds.astype(bf16), params["wa"].astype(bf16),
                preferred_element_type=f32) + params["ba"]
    t = jnp.dot(text_embeds.astype(bf16), params["wt"].astype(bf16),
                preferred_element_type=f32) + params["bt"]
    a = a / jnp.maximum(jnp.linalg.norm(a, axis=-1, keepdims=True), 1e-12)
    t = t / jnp.maximum(jnp.linalg.norm(t, axis=-1, keepdims=True), 1e-12)
    temp = jnp.exp(params["temp"][0, 0])
    sims = jnp.dot((a * temp).astype(bf16), t.astype(bf16).T,
                   preferred_element_type=f32)
    exp_sims = jnp.exp(sims)
    B = a.shape[0]
    eye = jnp.eye(B, dtype=bool)
    num = jnp.sum(jnp.where(eye, exp_sims, 0.0), axis=-1)
    off = jnp.where(eye, 0.0, exp_sims)
    den_i = jnp.sum(off, axis=-1)
    den_j = jnp.sum(off, axis=0)
    eps = 1e-20
    loss_n = (-jnp.log(jnp.maximum(num, eps))
              + 0.5 * (jnp.log(jnp.maximum(den_i, eps)) + jnp.log(jnp.maximum(den_j, eps))))
    return jnp.mean(loss_n)


# ------------------------------ main ---------------------------------------- #

if __name__ == "__main__":
    key = jax.random.PRNGKey(0)
    ks = jax.random.split(key, 8)

    B = 128          # batch (single 128-row tile -> 1 grid step)
    WAV_LEN = 64     # wav samples (stub)
    PATCH = 16
    AUDIO_DIM = 64   # audio_transformer.dim (padded to 128 inside the wrapper)
    TEXT_DIM = 64    # text_transformer.dim  (padded to 128 inside the wrapper)
    SEQ = 8          # text tokens (stub)
    VOCAB = 32
    DIM_LATENT = 128
    INIT_TEMP = 10.0

    params = {
        # MuLanModel parameters (projection weights stored pre-transposed [Din, dim_latent])
        "wa": 0.02 * jax.random.normal(ks[0], (AUDIO_DIM, DIM_LATENT), jnp.float32),
        "ba": 0.01 * jax.random.normal(ks[1], (1, DIM_LATENT), jnp.float32),
        "wt": 0.02 * jax.random.normal(ks[2], (TEXT_DIM, DIM_LATENT), jnp.float32),
        "bt": 0.01 * jax.random.normal(ks[3], (1, DIM_LATENT), jnp.float32),
        "temp": jnp.full((1, 1), math.log(INIT_TEMP), jnp.float32),
        # stub encoder parameters
        "patch_w": 0.1 * jax.random.normal(ks[4], (PATCH, AUDIO_DIM), jnp.float32),
        "patch_b": jnp.zeros((AUDIO_DIM,), jnp.float32),
        "tok_emb": 0.1 * jax.random.normal(ks[5], (VOCAB, TEXT_DIM), jnp.float32),
    }

    wavs = jax.random.normal(ks[6], (B, WAV_LEN), jnp.float32)
    texts = jax.random.randint(ks[7], (B, SEQ), 0, VOCAB)

    # external encoder stubs (glue)
    audio_embeds = audio_transformer_stub(wavs, params)   # [B, AUDIO_DIM]
    text_embeds = text_transformer_stub(texts, params)    # [B, TEXT_DIM]

    # Pallas kernels: MuLanModel forward (projection -> l2norm -> contrastive loss)
    loss = mulan_contrastive_loss(audio_embeds, text_embeds, params, tm=128)
    loss = jax.block_until_ready(loss)

    ref = reference_loss(audio_embeds, text_embeds, params)
    assert jnp.isfinite(loss), "loss is not finite"
    assert jnp.allclose(loss, ref, atol=3e-3, rtol=3e-3), (loss, ref)

    print("KERNEL_OK")
</pallas_src>

<mosaic_0001>
module attributes {stable_mosaic.version = 11 : i64} {
  func.func @_text_project_kernel(%arg0: i32, %arg1: memref<128x128xbf16, #tpu.memory_space<vmem>>, %arg2: memref<128x128xbf16, #tpu.memory_space<vmem>>, %arg3: memref<1x128xf32, #tpu.memory_space<vmem>>, %arg4: memref<128x128xbf16, #tpu.memory_space<vmem>>) attributes {dimension_semantics = [#tpu.dimension_semantics<arbitrary>], iteration_bounds = array<i64: 1>, scalar_prefetch = 0 : i64, scratch_operands = 0 : i64, tpu.core_type = #tpu.core_type<tc>, window_params = [{pipeline_mode = #tpu.pipeline_mode<synchronous>, transform_indices = @transform_0, window_bounds = array<i64: 128, 128>}, {pipeline_mode = #tpu.pipeline_mode<synchronous>, transform_indices = @transform_1, window_bounds = array<i64: 128, 128>}, {pipeline_mode = #tpu.pipeline_mode<synchronous>, transform_indices = @transform_2, window_bounds = array<i64: 1, 128>}, {pipeline_mode = #tpu.pipeline_mode<synchronous>, transform_indices = @transform_3, window_bounds = array<i64: 128, 128>}]} {
    %c0 = arith.constant 0 : index
    %c0_0 = arith.constant 0 : index
    %0 = vector.load %arg1[%c0, %c0_0] : memref<128x128xbf16, #tpu.memory_space<vmem>>, vector<128x128xbf16>
    %c0_1 = arith.constant 0 : index
    %c0_2 = arith.constant 0 : index
    %1 = vector.load %arg2[%c0_1, %c0_2] : memref<128x128xbf16, #tpu.memory_space<vmem>>, vector<128x128xbf16>
    %cst = arith.constant dense<0.000000e+00> : vector<128x128xf32>
    %2 = tpu.matmul %0, %1, %cst {dimension_numbers = #tpu.dot_dimension_numbers<[1], [0], [0], [1], [0, 0, 1, 1], [], []>} : vector<128x128xbf16>, vector<128x128xbf16>, vector<128x128xf32> -> vector<128x128xf32>
    %c0_3 = arith.constant 0 : index
    %c0_4 = arith.constant 0 : index
    %3 = vector.load %arg3[%c0_3, %c0_4] : memref<1x128xf32, #tpu.memory_space<vmem>>, vector<1x128xf32>
    %4 = vector.broadcast %3 : vector<1x128xf32> to vector<128x128xf32>
    %5 = arith.addf %2, %4 : vector<128x128xf32>
    %6 = arith.mulf %5, %5 : vector<128x128xf32>
    %cst_5 = arith.constant dense<0.000000e+00> : vector<128xf32>
    %7 = vector.multi_reduction <add>, %6, %cst_5 [1] : vector<128x128xf32> to vector<128xf32>
    %8 = vector.shape_cast %7 : vector<128xf32> to vector<128x1xf32>
    %cst_6 = arith.constant 1.000000e-24 : f32
    %9 = vector.broadcast %cst_6 : f32 to vector<128x1xf32>
    %10 = arith.maximumf %8, %9 : vector<128x1xf32>
    %11 = math.rsqrt %10 : vector<128x1xf32>
    %12 = vector.broadcast %11 : vector<128x1xf32> to vector<128x128xf32>
    %13 = arith.mulf %5, %12 : vector<128x128xf32>
    %14 = arith.truncf %13 : vector<128x128xf32> to vector<128x128xbf16>
    %c0_7 = arith.constant 0 : index
    %c0_8 = arith.constant 0 : index
    %15 = vector.load %arg4[%c0_7, %c0_8] : memref<128x128xbf16, #tpu.memory_space<vmem>>, vector<128x128xbf16>
    tpu.vector_store %arg4[%c0_7, %c0_8], %14 {strides = array<i32>} : memref<128x128xbf16, #tpu.memory_space<vmem>>, vector<128x128xbf16>,
    return
  }
  func.func @transform_0(%arg0: i32) -> (i32, i32) {
    %c0_i32 = arith.constant 0 : i32
    %c0_i32_0 = arith.constant 0 : i32
    %c0_i32_1 = arith.constant 0 : i32
    return %c0_i32, %c0_i32_0 : i32, i32
  }
  func.func @transform_1(%arg0: i32) -> (i32, i32) {
    %c0_i32 = arith.constant 0 : i32
    %c0_i32_0 = arith.constant 0 : i32
    %c0_i32_1 = arith.constant 0 : i32
    return %c0_i32, %c0_i32_0 : i32, i32
  }
  func.func @transform_2(%arg0: i32) -> (i32, i32) {
    %c0_i32 = arith.constant 0 : i32
    %c0_i32_0 = arith.constant 0 : i32
    %c0_i32_1 = arith.constant 0 : i32
    return %c0_i32, %c0_i32_0 : i32, i32
  }
  func.func @transform_3(%arg0: i32) -> (i32, i32) {
    %c0_i32 = arith.constant 0 : i32
    %c0_i32_0 = arith.constant 0 : i32
    %c0_i32_1 = arith.constant 0 : i32
    return %c0_i32, %c0_i32_0 : i32, i32
  }
}

</mosaic_0001>

<llo_original>
// kernel: tpu_custom_call.1
$region0: #{tpu_custom_call.1}
  #allocation0 [shape = 'u32[]', space=smem, size = 0x4, offset = 0x4, fixed_abs, tag = 'smem constant byte address 0x4 - core index']
  #allocation1 [shape = 'u32[144,128]{1,0:T(1,128)}', space=vmem, size = 0x12000, scoped, tag = 'internal scratch']
  %s0 = inlined_call_operand.hbm [shape: bf16[128,128], index: 0, kind: input, shape index: {}]
  %s1 = inlined_call_operand.hbm [shape: bf16[128,128], index: 1, kind: input, shape index: {}]
  %s2 = inlined_call_operand.vmem [shape: f32[1,128], index: 2, kind: input, shape index: {}]
  %s3 = inlined_call_operand.hbm [shape: bf16[128,128], index: 3, kind: output, shape index: {}]
  %s4 = sld [smem:[#allocation0]]
  $region30: #{tpu_custom_call.1} parent=0
    _
  %s6 = ssub.s32 1, %s4
  %s7 = scalar_select 0, %s6, %s4
  $region1: #{tpu_custom_call.1} parent=0
    #allocation2 [shape = 'u8[32768]{0}', space=vmem, size = 0x8000, scoped, tag = 'input window, operand 0, single buffered']
    #allocation3 [shape = 's32[1]{0}', space=sflag, size = 0x4, scoped, tag = 'scoped memory for tpu_custom_call.1']
    #allocation4 [shape = 's32[1]{0}', space=sflag, size = 0x4, scoped, tag = 'scoped memory for tpu_custom_call.1']
    #allocation5 [shape = 'u8[32768]{0}', space=vmem, size = 0x8000, scoped, tag = 'input window, operand 1, single buffered']
    #allocation6 [shape = 's32[1]{0}', space=sflag, size = 0x4, scoped, tag = 'scoped memory for tpu_custom_call.1']
    #allocation7 [shape = 'u8[32768]{0}', space=vmem, size = 0x8000, scoped, tag = 'output window, operand 0, single buffered']
    %8 = vsyncpa [#allocation3], 0
    %9 = vsyncpa [#allocation6], 0
    %10 = vsyncpa [#allocation4], 0
    // Predicated region
    $region2: #{tpu_custom_call.1} parent=1 // pred_check
      _
    $region3: #{tpu_custom_call.1} parent=1 // pred_check_branch
      %12 = sbr.rel (0) target = $region5
    $region4: #{tpu_custom_call.1} parent=1 // pred_region
      %s14 = ssub.s32 1024, 1024
      %15 = vsyncadd [#allocation3], %s14
      %s16 = sshll.u32 [#allocation2], 4
      %s17 = int_to_ptr.vmem [resolvable:$true] %s16
      %22 = dma.hbm_to_vmem [thread:$0]  %s0, 1024, %s17, [#allocation3], 64, 64, 4
    $region5: #{tpu_custom_call.1} parent=1 // pred_fallthru
      _
    // Predicated region
    $region6: #{tpu_custom_call.1} parent=1 // pred_check
      _
    $region7: #{tpu_custom_call.1} parent=1 // pred_check_branch
      %24 = sbr.rel (0) target = $region9
    $region8: #{tpu_custom_call.1} parent=1 // pred_region
      %s26 = ssub.s32 1024, 1024
      %27 = vsyncadd [#allocation6], %s26
      %s28 = sshll.u32 [#allocation5], 4
      %s29 = int_to_ptr.vmem [resolvable:$true] %s28
      %34 = dma.hbm_to_vmem [thread:$0]  %s1, 1024, %s29, [#allocation6], 64, 64, 4
    $region9: #{tpu_custom_call.1} parent=1 // pred_fallthru
      _
    // Predicated region
    $region10: #{tpu_custom_call.1} parent=1 // pred_check
      _
    $region11: #{tpu_custom_call.1} parent=1 // pred_check_branch
      %36 = sbr.rel (0) target = $region13
    $region12: #{tpu_custom_call.1} parent=1 // pred_region
      _
    $region13: #{tpu_custom_call.1} parent=1 // pred_fallthru
      _
    // Predicated region
    $region14: #{tpu_custom_call.1} parent=1 // pred_check
      _
    $region15: #{tpu_custom_call.1} parent=1 // pred_check_branch
      %38 = sbr.rel (0) target = $region17
    $region16: #{tpu_custom_call.1} parent=1 // pred_region
      %39 = dma.done [#allocation3], 1024
    $region17: #{tpu_custom_call.1} parent=1 // pred_fallthru
      _
    // Predicated region
    $region18: #{tpu_custom_call.1} parent=1 // pred_check
      _
    $region19: #{tpu_custom_call.1} parent=1 // pred_check_branch
      %41 = sbr.rel (0) target = $region21
    $region20: #{tpu_custom_call.1} parent=1 // pred_region
      %42 = dma.done [#allocation6], 1024
    $region21: #{tpu_custom_call.1} parent=1 // pred_fallthru
      _
    %v44 = vld [vmem:[#allocation2] sm:$0xf]
    %v45 = vld [vmem:[#allocation2 + $0x4] sm:$0xf]
    %v46 = vld [vmem:[#allocation2 + $0x8] sm:$0xf]
    %v47 = vld [vmem:[#allocation2 + $0xc] sm:$0xf]
    %v48 = vld [vmem:[#allocation2 + $0x10] sm:$0xf]
    %v49 = vld [vmem:[#allocation2 + $0x14] sm:$0xf]
    %v50 = vld [vmem:[#allocation2 + $0x18] sm:$0xf]
    %v51 = vld [vmem:[#allocation2 + $0x1c] sm:$0xf]
    %v52 = vld [vmem:[#allocation2 + $0x20] sm:$0xf]
    %v53 = vld [vmem:[#allocation2 + $0x24] sm:$0xf]
    %v54 = vld [vmem:[#allocation2 + $0x28] sm:$0xf]
    %v55 = vld [vmem:[#allocation2 + $0x2c] sm:$0xf]
    %v56 = vld [vmem:[#allocation2 + $0x30] sm:$0xf]
    %v57 = vld [vmem:[#allocation2 + $0x34] sm:$0xf]
    %v58 = vld [vmem:[#allocation2 + $0x38] sm:$0xf]
    %v59 = vld [vmem:[#allocation2 + $0x3c] sm:$0xf]
    %v60 = vld [vmem:[#allocation5] sm:$0xf]
    %v61 = vld [vmem:[#allocation5 + $0x4] sm:$0xf]
    %v62 = vld [vmem:[#allocation5 + $0x8] sm:$0xf]
    %v63 = vld [vmem:[#allocation5 + $0xc] sm:$0xf]
    %v64 = vld [vmem:[#allocation5 + $0x10] sm:$0xf]
    %v65 = vld [vmem:[#allocation5 + $0x14] sm:$0xf]
    %v66 = vld [vmem:[#allocation5 + $0x18] sm:$0xf]
    %v67 = vld [vmem:[#allocation5 + $0x1c] sm:$0xf]
    %v68 = vld [vmem:[#allocation5 + $0x20] sm:$0xf]
    %v69 = vld [vmem:[#allocation5 + $0x24] sm:$0xf]
    %v70 = vld [vmem:[#allocation5 + $0x28] sm:$0xf]
    %v71 = vld [vmem:[#allocation5 + $0x2c] sm:$0xf]
    %v72 = vld [vmem:[#allocation5 + $0x30] sm:$0xf]
    %v73 = vld [vmem:[#allocation5 + $0x34] sm:$0xf]
    %v74 = vld [vmem:[#allocation5 + $0x38] sm:$0xf]
    %v75 = vld [vmem:[#allocation5 + $0x3c] sm:$0xf]
    %v76 = vld [vmem:[%s2] sm:$0x1]
    %v78 = vlaneseq
    %v79 = vshrl.u32 %v78, 7
    %v80 = vsub.s32 0, %v79
    %v81 = vrot.slane %v76, %v80
    %v99 = vunpack.c.l.b16 %v44
    %v100 = vunpack.c.l.b16 %v45
    %v101 = vunpack.c.l.b16 %v46
    %v102 = vunpack.c.l.b16 %v47
    %v103 = vunpack.c.l.b16 %v48
    %v104 = vunpack.c.l.b16 %v49
    %v105 = vunpack.c.l.b16 %v50
    %v106 = vunpack.c.l.b16 %v51
    %v107 = vunpack.c.l.b16 %v52
    %v108 = vunpack.c.l.b16 %v53
    %v109 = vunpack.c.l.b16 %v54
    %v110 = vunpack.c.l.b16 %v55
    %v111 = vunpack.c.l.b16 %v56
    %v112 = vunpack.c.l.b16 %v57
    %v113 = vunpack.c.l.b16 %v58
    %v114 = vunpack.c.l.b16 %v59
    %v115 = vpack.c.b16 %v100, %v99
    %v116 = vpack.c.b16 %v102, %v101
    %v117 = vpack.c.b16 %v104, %v103
    %v118 = vpack.c.b16 %v106, %v105
    %v119 = vpack.c.b16 %v108, %v107
    %v120 = vpack.c.b16 %v110, %v109
    %v121 = vpack.c.b16 %v112, %v111
    %v122 = vpack.c.b16 %v114, %v113
    %v147 = vunpack.c.l.b16 %v60
    %v148 = vunpack.c.l.b16 %v61
    %v149 = vunpack.c.l.b16 %v62
    %v150 = vunpack.c.l.b16 %v63
    %v151 = vunpack.c.l.b16 %v64
    %v152 = vunpack.c.l.b16 %v65
    %v153 = vunpack.c.l.b16 %v66
    %v154 = vunpack.c.l.b16 %v67
    %v155 = vunpack.c.l.b16 %v68
    %v156 = vunpack.c.l.b16 %v69
    %v157 = vunpack.c.l.b16 %v70
    %v158 = vunpack.c.l.b16 %v71
    %v159 = vunpack.c.l.b16 %v72
    %v160 = vunpack.c.l.b16 %v73
    %v161 = vunpack.c.l.b16 %v74
    %v162 = vunpack.c.l.b16 %v75
    %v163 = vpack.c.b16 %v148, %v147
    %v164 = vpack.c.b16 %v150, %v149
    %v165 = vpack.c.b16 %v152, %v151
    %v166 = vpack.c.b16 %v154, %v153
    %v167 = vpack.c.b16 %v156, %v155
    %v168 = vpack.c.b16 %v158, %v157
    %v169 = vpack.c.b16 %v160, %v159
    %v170 = vpack.c.b16 %v162, %v161
    %179 = vmatprep.subr.bf16.mxu0 0
    %180 = vmatpush1.bf16.msra.mxu0 %v170
    %181 = vmatprep.subr.bf16.mxu0 0
    %182 = vmatpush1.bf16.msra.mxu0 %v169
    %183 = vmatprep.subr.bf16.mxu0 0
    %184 = vmatpush1.bf16.msra.mxu0 %v168
    %185 = vmatprep.subr.bf16.mxu0 0
    %186 = vmatpush1.bf16.msra.mxu0 %v167
    %187 = vmatprep.subr.bf16.mxu0 0
    %188 = vmatpush1.bf16.msra.mxu0 %v166
    %189 = vmatprep.subr.bf16.mxu0 0
    %190 = vmatpush1.bf16.msra.mxu0 %v165
    %191 = vmatprep.subr.bf16.mxu0 0
    %192 = vmatpush1.bf16.msra.mxu0 %v164
    %193 = vmatprep.subr.bf16.mxu0 0
    %194 = vmatpush1.bf16.msra.mxu0 %v163
    %195 = vmatprep.subr.bf16.mxu0 0
    %196 = vmatpush2.bf16.msra.mxu0 0
    %197 = vmatprep.subr.bf16.mxu0 0
    %198 = vmatpush2.bf16.msra.mxu0 0
    %199 = vmatprep.subr.bf16.mxu0 0
    %200 = vmatpush2.bf16.msra.mxu0 0
    %201 = vmatprep.subr.bf16.mxu0 0
    %202 = vmatpush2.bf16.msra.mxu0 0
    %203 = vmatprep.subr.bf16.mxu0 0
    %204 = vmatpush2.bf16.msra.mxu0 0
    %205 = vmatprep.subr.bf16.mxu0 0
    %206 = vmatpush2.bf16.msra.mxu0 0
    %207 = vmatprep.subr.bf16.mxu0 0
    %208 = vmatpush2.bf16.msra.mxu0 0
    %209 = vmatprep.subr.bf16.mxu0 0
    %210 = vmatpush2.bf16.msra.mxu0 0
    %211 = vmatprep.mubr.bf16.mxu0 0
    %212 = vmatmul.mubr.bf16.gmra.mxu0 %v115
    %v213 = vpop.f32.mrf.mxu0
    %v214 = vadd.f32 %v81, %v213
    %v215 = vpop.f32.mrf.mxu0
    %v216 = vpop.f32.mrf.mxu0
    %v217 = vadd.f32 %v81, %v216
    %v218 = vpop.f32.mrf.mxu0
    %219 = vmatprep.mubr.bf16.mxu0 0
    %220 = vmatmul.mubr.bf16.gmra.mxu0 %v116
    %v221 = vpop.f32.mrf.mxu0
    %v222 = vadd.f32 %v81, %v221
    %v223 = vpop.f32.mrf.mxu0
    %v224 = vpop.f32.mrf.mxu0
    %v225 = vadd.f32 %v81, %v224
    %v226 = vpop.f32.mrf.mxu0
    %227 = vmatprep.mubr.bf16.mxu0 0
    %228 = vmatmul.mubr.bf16.gmra.mxu0 %v117
    %v229 = vpop.f32.mrf.mxu0
    %v230 = vadd.f32 %v81, %v229
    %v231 = vpop.f32.mrf.mxu0
    %v232 = vpop.f32.mrf.mxu0
    %v233 = vadd.f32 %v81, %v232
    %v234 = vpop.f32.mrf.mxu0
    %235 = vmatprep.mubr.bf16.mxu0 0
    %236 = vmatmul.mubr.bf16.gmra.mxu0 %v118
    %v237 = vpop.f32.mrf.mxu0
    %v238 = vadd.f32 %v81, %v237
    %v239 = vpop.f32.mrf.mxu0
    %v240 = vpop.f32.mrf.mxu0
    %v241 = vadd.f32 %v81, %v240
    %v242 = vpop.f32.mrf.mxu0
    %243 = vmatprep.mubr.bf16.mxu0 0
    %244 = vmatmul.mubr.bf16.gmra.mxu0 %v119
    %v245 = vpop.f32.mrf.mxu0
    %v246 = vadd.f32 %v81, %v245
    %v247 = vpop.f32.mrf.mxu0
    %v248 = vpop.f32.mrf.mxu0
    %v249 = vadd.f32 %v81, %v248
    %v250 = vpop.f32.mrf.mxu0
    %251 = vmatprep.mubr.bf16.mxu0 0
    %252 = vmatmul.mubr.bf16.gmra.mxu0 %v120
    %v253 = vpop.f32.mrf.mxu0
    %v254 = vadd.f32 %v81, %v253
    %v255 = vpop.f32.mrf.mxu0
    %v256 = vpop.f32.mrf.mxu0
    %v257 = vadd.f32 %v81, %v256
    %v258 = vpop.f32.mrf.mxu0
    %259 = vmatprep.mubr.bf16.mxu0 0
    %260 = vmatmul.mubr.bf16.gmra.mxu0 %v121
    %v261 = vpop.f32.mrf.mxu0
    %v262 = vadd.f32 %v81, %v261
    %v263 = vpop.f32.mrf.mxu0
    %v264 = vpop.f32.mrf.mxu0
    %v265 = vadd.f32 %v81, %v264
    %v266 = vpop.f32.mrf.mxu0
    %267 = vmatprep.mubr.bf16.mxu0 0
    %268 = vmatmul.mubr.bf16.gmra.mxu0 %v122
    %v269 = vpop.f32.mrf.mxu0
    %v270 = vadd.f32 %v81, %v269
    %v271 = vpop.f32.mrf.mxu0
    %v272 = vpop.f32.mrf.mxu0
    %v273 = vadd.f32 %v81, %v272
    %v274 = vpop.f32.mrf.mxu0
    %275 = vdwg.mxu0
    %v276 = vmul.f32 %v214, %v214
    %v277 = vmul.f32 %v217, %v217
    %v278 = vmul.f32 %v222, %v222
    %v279 = vmul.f32 %v225, %v225
    %v280 = vmul.f32 %v230, %v230
    %v281 = vmul.f32 %v233, %v233
    %v282 = vmul.f32 %v238, %v238
    %v283 = vmul.f32 %v241, %v241
    %v284 = vmul.f32 %v246, %v246
    %v285 = vmul.f32 %v249, %v249
    %v286 = vmul.f32 %v254, %v254
    %v287 = vmul.f32 %v257, %v257
    %v288 = vmul.f32 %v262, %v262
    %v289 = vmul.f32 %v265, %v265
    %v290 = vmul.f32 %v270, %v270
    %v291 = vmul.f32 %v273, %v273
    %292 = vadd.xlane.f32.xlu0 %v276
    %v293 = vpop.xlane.xlu0 %292
    %294 = vadd.xlane.f32.xlu0 %v277
    %v295 = vpop.xlane.xlu0 %294
    %296 = vadd.xlane.f32.xlu0 %v278
    %v297 = vpop.xlane.xlu0 %296
    %298 = vadd.xlane.f32.xlu0 %v279
    %v299 = vpop.xlane.xlu0 %298
    %300 = vadd.xlane.f32.xlu0 %v280
    %v301 = vpop.xlane.xlu0 %300
    %302 = vadd.xlane.f32.xlu0 %v281
    %v303 = vpop.xlane.xlu0 %302
    %304 = vadd.xlane.f32.xlu0 %v282
    %v305 = vpop.xlane.xlu0 %304
    %306 = vadd.xlane.f32.xlu0 %v283
    %v307 = vpop.xlane.xlu0 %306
    %308 = vadd.xlane.f32.xlu0 %v284
    %v309 = vpop.xlane.xlu0 %308
    %310 = vadd.xlane.f32.xlu0 %v285
    %v311 = vpop.xlane.xlu0 %310
    %312 = vadd.xlane.f32.xlu0 %v286
    %v313 = vpop.xlane.xlu0 %312
    %314 = vadd.xlane.f32.xlu0 %v287
    %v315 = vpop.xlane.xlu0 %314
    %316 = vadd.xlane.f32.xlu0 %v288
    %v317 = vpop.xlane.xlu0 %316
    %318 = vadd.xlane.f32.xlu0 %v289
    %v319 = vpop.xlane.xlu0 %318
    %320 = vadd.xlane.f32.xlu0 %v290
    %v321 = vpop.xlane.xlu0 %320
    %322 = vadd.xlane.f32.xlu0 %v291
    %v323 = vpop.xlane.xlu0 %322
    %v324 = vmax.f32 %v293, 1e-24
    %v325 = vmax.f32 %v295, 1e-24
    %v326 = vmax.f32 %v297, 1e-24
    %v327 = vmax.f32 %v299, 1e-24
    %v328 = vmax.f32 %v301, 1e-24
    %v329 = vmax.f32 %v303, 1e-24
    %v330 = vmax.f32 %v305, 1e-24
    %v331 = vmax.f32 %v307, 1e-24
    %v332 = vmax.f32 %v309, 1e-24
    %v333 = vmax.f32 %v311, 1e-24
    %v334 = vmax.f32 %v313, 1e-24
    %v335 = vmax.f32 %v315, 1e-24
    %v336 = vmax.f32 %v317, 1e-24
    %v337 = vmax.f32 %v319, 1e-24
    %v338 = vmax.f32 %v321, 1e-24
    %v339 = vmax.f32 %v323, 1e-24
    %v340 = vrsqrt.pop %v324
    %v341 = vrsqrt.pop %v325
    %v342 = vrsqrt.pop %v326
    %v343 = vrsqrt.pop %v327
    %v344 = vrsqrt.pop %v328
    %v345 = vrsqrt.pop %v329
    %v346 = vrsqrt.pop %v330
    %v347 = vrsqrt.pop %v331
    %v348 = vrsqrt.pop %v332
    %v349 = vrsqrt.pop %v333
    %v350 = vrsqrt.pop %v334
    %v351 = vrsqrt.pop %v335
    %v352 = vrsqrt.pop %v336
    %v353 = vrsqrt.pop %v337
    %v354 = vrsqrt.pop %v338
    %v355 = vrsqrt.pop %v339
    %v356 = vmul.f32 %v214, %v340
    %v357 = vmul.f32 %v217, %v341
    %v358 = vmul.f32 %v222, %v342
    %v359 = vmul.f32 %v225, %v343
    %v360 = vmul.f32 %v230, %v344
    %v361 = vmul.f32 %v233, %v345
    %v362 = vmul.f32 %v238, %v346
    %v363 = vmul.f32 %v241, %v347
    %v364 = vmul.f32 %v246, %v348
    %v365 = vmul.f32 %v249, %v349
    %v366 = vmul.f32 %v254, %v350
    %v367 = vmul.f32 %v257, %v351
    %v368 = vmul.f32 %v262, %v352
    %v369 = vmul.f32 %v265, %v353
    %v370 = vmul.f32 %v270, %v354
    %v371 = vmul.f32 %v273, %v355
    %v372 = vpack.c.bf16 %v357, %v356
    %v373 = vpack.c.bf16 %v359, %v358
    %v374 = vpack.c.bf16 %v361, %v360
    %v375 = vpack.c.bf16 %v363, %v362
    %v376 = vpack.c.bf16 %v365, %v364
    %v377 = vpack.c.bf16 %v367, %v366
    %v378 = vpack.c.bf16 %v369, %v368
    %v379 = vpack.c.bf16 %v371, %v370
    %v388 = vunpack.c.l.b16 %v372
    %v389 = vunpack.c.h.b16 %v372
    %v390 = vunpack.c.l.b16 %v373
    %v391 = vunpack.c.h.b16 %v373
    %v392 = vunpack.c.l.b16 %v374
    %v393 = vunpack.c.h.b16 %v374
    %v394 = vunpack.c.l.b16 %v375
    %v395 = vunpack.c.h.b16 %v375
    %v396 = vunpack.c.l.b16 %v376
    %v397 = vunpack.c.h.b16 %v376
    %v398 = vunpack.c.l.b16 %v377
    %v399 = vunpack.c.h.b16 %v377
    %v400 = vunpack.c.l.b16 %v378
    %v401 = vunpack.c.h.b16 %v378
    %v402 = vunpack.c.l.b16 %v379
    %v403 = vunpack.c.h.b16 %v379
    %v404 = vpack.c.b16 %v388, %v388
    %v405 = vpack.c.b16 %v389, %v389
    %v406 = vpack.c.b16 %v390, %v390
    %v407 = vpack.c.b16 %v391, %v391
    %v408 = vpack.c.b16 %v392, %v392
    %v409 = vpack.c.b16 %v393, %v393
    %v410 = vpack.c.b16 %v394, %v394
    %v411 = vpack.c.b16 %v395, %v395
    %v412 = vpack.c.b16 %v396, %v396
    %v413 = vpack.c.b16 %v397, %v397
    %v414 = vpack.c.b16 %v398, %v398
    %v415 = vpack.c.b16 %v399, %v399
    %v416 = vpack.c.b16 %v400, %v400
    %v417 = vpack.c.b16 %v401, %v401
    %v418 = vpack.c.b16 %v402, %v402
    %v419 = vpack.c.b16 %v403, %v403
    %436 = vst [vmem:[#allocation7] sm:$0xf] %v404
    %437 = vst [vmem:[#allocation7 + $0x4] sm:$0xf] %v405
    %438 = vst [vmem:[#allocation7 + $0x8] sm:$0xf] %v406
    %439 = vst [vmem:[#allocation7 + $0xc] sm:$0xf] %v407
    %440 = vst [vmem:[#allocation7 + $0x10] sm:$0xf] %v408
    %441 = vst [vmem:[#allocation7 + $0x14] sm:$0xf] %v409
    %442 = vst [vmem:[#allocation7 + $0x18] sm:$0xf] %v410
    %443 = vst [vmem:[#allocation7 + $0x1c] sm:$0xf] %v411
    %444 = vst [vmem:[#allocation7 + $0x20] sm:$0xf] %v412
    %445 = vst [vmem:[#allocation7 + $0x24] sm:$0xf] %v413
    %446 = vst [vmem:[#allocation7 + $0x28] sm:$0xf] %v414
    %447 = vst [vmem:[#allocation7 + $0x2c] sm:$0xf] %v415
    %448 = vst [vmem:[#allocation7 + $0x30] sm:$0xf] %v416
    %449 = vst [vmem:[#allocation7 + $0x34] sm:$0xf] %v417
    %450 = vst [vmem:[#allocation7 + $0x38] sm:$0xf] %v418
    %451 = vst [vmem:[#allocation7 + $0x3c] sm:$0xf] %v419
    // Predicated region
    $region22: #{tpu_custom_call.1} parent=1 // pred_check
      _
    $region23: #{tpu_custom_call.1} parent=1 // pred_check_branch
      %453 = sbr.rel (0) target = $region25
    $region24: #{tpu_custom_call.1} parent=1 // pred_region
      %s455 = ssub.s32 1024, 1024
      %456 = vsyncadd [#allocation4], %s455
      %s457 = sshll.u32 [#allocation7], 4
      %s458 = int_to_ptr.vmem [resolvable:$true] %s457
      %463 = dma.vmem_to_hbm [thread:$0]  %s458, 1024, %s3, [#allocation4], 64, 64, 4
    $region25: #{tpu_custom_call.1} parent=1 // pred_fallthru
      _
    // Predicated region
    $region26: #{tpu_custom_call.1} parent=1 // pred_check
      _
    $region27: #{tpu_custom_call.1} parent=1 // pred_check_branch
      %465 = sbr.rel (0) target = $region29
    $region28: #{tpu_custom_call.1} parent=1 // pred_region
      %466 = dma.done [#allocation4], 1024
    $region29: #{tpu_custom_call.1} parent=1 // pred_fallthru
      _
    %467 = vsyncpa [#allocation3], 1
    %468 = vsyncpa [#allocation6], 1
    %469 = vsyncpa [#allocation4], 1

</llo_original>
